<compile_context>
chip_gen: v7x
topology: tpu7x:2x2x1
jax: 0.10.0
libtpu: 0.0.40
codegen_flags: <defaults>
</compile_context>

<pallas_src>
import functools
import math

import jax
import jax.numpy as jnp
from jax.experimental import pallas as pl
from jax.experimental.pallas import tpu as pltpu

_ZP = 128          # padded latent width per head (mu / log_var) -> lane-dense vregs
_MAX_TILE = 512    # row tile (multiple of 128 sublane*lane friendly; >=512 ~ HBM roofline)


def _round_up(n, m):
    return ((n + m - 1) // m) * m


def _vae_kernel(x_ref, eps_ref,
                w1_ref, b1_ref, w23_ref, b23_ref,
                w4_ref, b4_ref, w5_ref, b5_ref,
                xhat_ref, mulv_ref):
    """One row-tile of the full VAE forward, entirely in VMEM."""
    # ---- encode: h = relu(x @ W1 + b1)  (bf16 operands, f32 accumulate) ----
    x = x_ref[...]                                                     # (T, D) bf16
    h = jnp.dot(x, w1_ref[...], preferred_element_type=jnp.float32) + b1_ref[...]
    h = jnp.maximum(h, 0.0)

    # ---- fused mu / log_var head: single full-width MXU pass ----
    mulv = jnp.dot(h.astype(jnp.bfloat16), w23_ref[...],
                   preferred_element_type=jnp.float32) + b23_ref[...]  # (T, 2*_ZP) f32
    mu = mulv[:, :_ZP]
    log_var = mulv[:, _ZP:]

    # ---- reparameterization: z = mu + exp(0.5 * log_var) * eps  (f32) ----
    sigma = jnp.exp(log_var * 0.5)
    z = mu + sigma * eps_ref[...]                                      # (T, _ZP) f32

    # ---- decode: x_hat = sigmoid(relu(z @ W4 + b4) @ W5 + b5) ----
    h2 = jnp.dot(z.astype(jnp.bfloat16), w4_ref[...],
                 preferred_element_type=jnp.float32) + b4_ref[...]
    h2 = jnp.maximum(h2, 0.0)
    logits = jnp.dot(h2.astype(jnp.bfloat16), w5_ref[...],
                     preferred_element_type=jnp.float32) + b5_ref[...]

    xhat_ref[...] = jax.nn.sigmoid(logits)
    mulv_ref[...] = mulv


def _linear_params(key, in_dim, out_dim):
    """PyTorch-style uniform(-1/sqrt(fan_in), 1/sqrt(fan_in)) init, deterministic."""
    kw, kb = jax.random.split(key)
    bound = 1.0 / math.sqrt(in_dim)
    w = jax.random.uniform(kw, (in_dim, out_dim), jnp.float32, -bound, bound)
    b = jax.random.uniform(kb, (1, out_dim), jnp.float32, -bound, bound)
    return w, b


class VAEPallas:
    def __init__(self, batch_size, input_dim=256, h_dim=256, z_dim=20, seed=0):
        self.batch_size = batch_size
        self.input_dim = input_dim
        self.h_dim = h_dim
        self.z_dim = z_dim
        assert z_dim <= _ZP

        key = jax.random.PRNGKey(seed)
        k1, k2, k3, k4, k5 = jax.random.split(key, 5)
        w1, b1 = _linear_params(k1, input_dim, h_dim)
        w2, b2 = _linear_params(k2, h_dim, z_dim)
        w3, b3 = _linear_params(k3, h_dim, z_dim)
        w4, b4 = _linear_params(k4, z_dim, h_dim)
        w5, b5 = _linear_params(k5, h_dim, input_dim)

        # Fuse mu/log_var heads into one lane-dense (h_dim, 2*_ZP) weight.
        w23 = jnp.zeros((h_dim, 2 * _ZP), jnp.float32)
        w23 = w23.at[:, :z_dim].set(w2).at[:, _ZP:_ZP + z_dim].set(w3)
        b23 = jnp.zeros((1, 2 * _ZP), jnp.float32)
        b23 = b23.at[:, :z_dim].set(b2).at[:, _ZP:_ZP + z_dim].set(b3)
        # Pad decoder input (z) to _ZP lanes: extra rows of W4 are zero, so the
        # padded z lanes (which carry noise) never influence the output.
        w4p = jnp.zeros((_ZP, h_dim), jnp.float32).at[:z_dim, :].set(w4)

        # bf16 matmul operands (f32 accumulation in-kernel); biases stay f32.
        self.w1 = w1.astype(jnp.bfloat16)
        self.b1 = b1
        self.w23 = w23.astype(jnp.bfloat16)
        self.b23 = b23
        self.w4 = w4p.astype(jnp.bfloat16)
        self.b4 = b4
        self.w5 = w5.astype(jnp.bfloat16)
        self.b5 = b5

    @functools.partial(jax.jit, static_argnums=0)
    def _run_kernel(self, x2d, eps2d):
        n = x2d.shape[0]
        d, h, zp2 = self.input_dim, self.h_dim, 2 * _ZP

        tile = min(_MAX_TILE, _round_up(max(n, 8), 8))
        n_pad = _round_up(n, tile)
        if n_pad != n:
            x2d = jnp.pad(x2d, ((0, n_pad - n), (0, 0)))
            eps2d = jnp.pad(eps2d, ((0, n_pad - n), (0, 0)))
        grid = (n_pad // tile,)

        row = lambda w: pl.BlockSpec((tile, w), lambda i: (i, 0))      # row-tiled
        res = lambda r, c: pl.BlockSpec((r, c), lambda i: (0, 0))      # VMEM-resident

        in_specs = [
            row(d),                 # x tile (bf16)
            row(_ZP),               # eps tile (f32)
            res(d, h), res(1, h),           # W1, b1
            res(h, zp2), res(1, zp2),       # W23, b23
            res(_ZP, h), res(1, h),         # W4, b4
            res(h, d), res(1, d),           # W5, b5
        ]
        out_specs = (row(d), row(zp2))
        out_shapes = (
            jax.ShapeDtypeStruct((n_pad, d), jnp.float32),      # x_hat
            jax.ShapeDtypeStruct((n_pad, zp2), jnp.float32),    # [mu | log_var] slab
        )

        flops = 2 * n_pad * (d * h + h * zp2 + _ZP * h + h * d)
        transcendentals = n_pad * (_ZP + d)                     # exp + sigmoid
        bytes_accessed = (
            n_pad * d * 2 + n_pad * _ZP * 4                     # x (bf16), eps (f32)
            + (d * h + h * zp2 + _ZP * h + h * d) * 2           # weights (bf16)
            + (h + zp2 + h + d) * 4                             # biases (f32)
            + n_pad * (d + zp2) * 4                             # outputs (f32)
        )

        x_hat, mulv = pl.pallas_call(
            _vae_kernel,
            out_shape=out_shapes,
            grid=grid,
            in_specs=in_specs,
            out_specs=out_specs,
            compiler_params=pltpu.CompilerParams(
                dimension_semantics=("parallel",),
                vmem_limit_bytes=32 * 1024 * 1024,
            ),
            cost_estimate=pl.CostEstimate(
                flops=flops,
                transcendentals=transcendentals,
                bytes_accessed=bytes_accessed,
            ),
        )(x2d, eps2d,
          self.w1, self.b1, self.w23, self.b23,
          self.w4, self.b4, self.w5, self.b5)

        # Slice back to real rows / real latent width (cheap XLA ops under jit).
        x_hat = x_hat[:n]
        mu = mulv[:n, :self.z_dim]
        log_var = mulv[:n, _ZP:_ZP + self.z_dim]
        return x_hat, mu, log_var

    def forward(self, x, eps_key):
        # x has arbitrary leading dims with input_dim last (nn.Linear semantics).
        lead_shape = x.shape[:-1]
        x2d = x.reshape(-1, self.input_dim).astype(jnp.bfloat16)
        n = x2d.shape[0]
        # torch.randn_like(sigma): standard normal noise (lane-padded to _ZP;
        # the padded lanes are killed by zero rows in W4 and never reach outputs).
        eps2d = jax.random.normal(eps_key, (n, _ZP), jnp.float32)

        x_hat2d, mu2d, logvar2d = self._run_kernel(x2d, eps2d)

        x_hat = x_hat2d.reshape(self.batch_size, -1, self.input_dim)
        mu = mu2d.reshape(*lead_shape, self.z_dim)
        log_var = logvar2d.reshape(*lead_shape, self.z_dim)
        return x_hat, mu, log_var


if __name__ == "__main__":
    batch_size, seq, input_dim, h_dim, z_dim = 2, 8, 256, 256, 20

    model = VAEPallas(batch_size, input_dim=input_dim, h_dim=h_dim,
                      z_dim=z_dim, seed=0)

    key = jax.random.PRNGKey(0)
    kx, keps = jax.random.split(key)
    x = jax.random.uniform(kx, (batch_size, seq, input_dim), jnp.float32)

    x_hat, mu, log_var = model.forward(x, keps)
    jax.block_until_ready((x_hat, mu, log_var))

    assert x_hat.shape == (batch_size, seq, input_dim)
    assert mu.shape == (batch_size, seq, z_dim)
    assert log_var.shape == (batch_size, seq, z_dim)
    assert bool(jnp.all(jnp.isfinite(x_hat)))
    assert bool(jnp.all((x_hat >= 0.0) & (x_hat <= 1.0)))
    assert bool(jnp.all(jnp.isfinite(mu)))
    assert bool(jnp.all(jnp.isfinite(log_var)))

    print("KERNEL_OK")
</pallas_src>

<mosaic_0001>
module attributes {stable_mosaic.version = 11 : i64} {
  func.func @_vae_kernel(%arg0: i32, %arg1: memref<16x256xbf16, #tpu.memory_space<vmem>>, %arg2: memref<16x128xf32, #tpu.memory_space<vmem>>, %arg3: memref<256x256xbf16, #tpu.memory_space<vmem>>, %arg4: memref<1x256xf32, #tpu.memory_space<vmem>>, %arg5: memref<256x256xbf16, #tpu.memory_space<vmem>>, %arg6: memref<1x256xf32, #tpu.memory_space<vmem>>, %arg7: memref<128x256xbf16, #tpu.memory_space<vmem>>, %arg8: memref<1x256xf32, #tpu.memory_space<vmem>>, %arg9: memref<256x256xbf16, #tpu.memory_space<vmem>>, %arg10: memref<1x256xf32, #tpu.memory_space<vmem>>, %arg11: memref<16x256xf32, #tpu.memory_space<vmem>>, %arg12: memref<16x256xf32, #tpu.memory_space<vmem>>) attributes {dimension_semantics = [#tpu.dimension_semantics<parallel>], iteration_bounds = array<i64: 1>, scalar_prefetch = 0 : i64, scratch_operands = 0 : i64, tpu.core_type = #tpu.core_type<tc>, window_params = [{transform_indices = @transform_0, window_bounds = array<i64: 16, 256>}, {transform_indices = @transform_1, window_bounds = array<i64: 16, 128>}, {pipeline_mode = #tpu.pipeline_mode<synchronous>, transform_indices = @transform_2, window_bounds = array<i64: 256, 256>}, {pipeline_mode = #tpu.pipeline_mode<synchronous>, transform_indices = @transform_3, window_bounds = array<i64: 1, 256>}, {pipeline_mode = #tpu.pipeline_mode<synchronous>, transform_indices = @transform_4, window_bounds = array<i64: 256, 256>}, {pipeline_mode = #tpu.pipeline_mode<synchronous>, transform_indices = @transform_5, window_bounds = array<i64: 1, 256>}, {pipeline_mode = #tpu.pipeline_mode<synchronous>, transform_indices = @transform_6, window_bounds = array<i64: 128, 256>}, {pipeline_mode = #tpu.pipeline_mode<synchronous>, transform_indices = @transform_7, window_bounds = array<i64: 1, 256>}, {pipeline_mode = #tpu.pipeline_mode<synchronous>, transform_indices = @transform_8, window_bounds = array<i64: 256, 256>}, {pipeline_mode = #tpu.pipeline_mode<synchronous>, transform_indices = @transform_9, window_bounds = array<i64: 1, 256>}, {transform_indices = @transform_10, window_bounds = array<i64: 16, 256>}, {transform_indices = @transform_11, window_bounds = array<i64: 16, 256>}]} {
    %c0 = arith.constant 0 : index
    %c0_0 = arith.constant 0 : index
    %0 = vector.load %arg1[%c0, %c0_0] : memref<16x256xbf16, #tpu.memory_space<vmem>>, vector<16x256xbf16>
    %c0_1 = arith.constant 0 : index
    %c0_2 = arith.constant 0 : index
    %1 = vector.load %arg3[%c0_1, %c0_2] : memref<256x256xbf16, #tpu.memory_space<vmem>>, vector<256x256xbf16>
    %cst = arith.constant dense<0.000000e+00> : vector<16x256xf32>
    %2 = tpu.matmul %0, %1, %cst {dimension_numbers = #tpu.dot_dimension_numbers<[1], [0], [0], [1], [0, 0, 1, 1], [], []>} : vector<16x256xbf16>, vector<256x256xbf16>, vector<16x256xf32> -> vector<16x256xf32>
    %c0_3 = arith.constant 0 : index
    %c0_4 = arith.constant 0 : index
    %3 = vector.load %arg4[%c0_3, %c0_4] : memref<1x256xf32, #tpu.memory_space<vmem>>, vector<1x256xf32>
    %4 = vector.broadcast %3 : vector<1x256xf32> to vector<16x256xf32>
    %5 = arith.addf %2, %4 : vector<16x256xf32>
    %cst_5 = arith.constant 0.000000e+00 : f32
    %6 = vector.broadcast %cst_5 : f32 to vector<16x256xf32>
    %7 = arith.maximumf %5, %6 : vector<16x256xf32>
    %8 = arith.truncf %7 : vector<16x256xf32> to vector<16x256xbf16>
    %c0_6 = arith.constant 0 : index
    %c0_7 = arith.constant 0 : index
    %9 = vector.load %arg5[%c0_6, %c0_7] : memref<256x256xbf16, #tpu.memory_space<vmem>>, vector<256x256xbf16>
    %cst_8 = arith.constant dense<0.000000e+00> : vector<16x256xf32>
    %10 = tpu.matmul %8, %9, %cst_8 {dimension_numbers = #tpu.dot_dimension_numbers<[1], [0], [0], [1], [0, 0, 1, 1], [], []>} : vector<16x256xbf16>, vector<256x256xbf16>, vector<16x256xf32> -> vector<16x256xf32>
    %c0_9 = arith.constant 0 : index
    %c0_10 = arith.constant 0 : index
    %11 = vector.load %arg6[%c0_9, %c0_10] : memref<1x256xf32, #tpu.memory_space<vmem>>, vector<1x256xf32>
    %12 = vector.broadcast %11 : vector<1x256xf32> to vector<16x256xf32>
    %13 = arith.addf %10, %12 : vector<16x256xf32>
    %14 = vector.extract_strided_slice %13 {offsets = [0, 0], sizes = [16, 128], strides = [1, 1]} : vector<16x256xf32> to vector<16x128xf32>
    %15 = vector.extract_strided_slice %13 {offsets = [0, 128], sizes = [16, 128], strides = [1, 1]} : vector<16x256xf32> to vector<16x128xf32>
    %cst_11 = arith.constant 5.000000e-01 : f32
    %16 = vector.broadcast %cst_11 : f32 to vector<16x128xf32>
    %17 = arith.mulf %15, %16 : vector<16x128xf32>
    %18 = math.exp %17 : vector<16x128xf32>
    %c0_12 = arith.constant 0 : index
    %c0_13 = arith.constant 0 : index
    %19 = vector.load %arg2[%c0_12, %c0_13] : memref<16x128xf32, #tpu.memory_space<vmem>>, vector<16x128xf32>
    %20 = arith.mulf %18, %19 : vector<16x128xf32>
    %21 = arith.addf %14, %20 : vector<16x128xf32>
    %22 = arith.truncf %21 : vector<16x128xf32> to vector<16x128xbf16>
    %c0_14 = arith.constant 0 : index
    %c0_15 = arith.constant 0 : index
    %23 = vector.load %arg7[%c0_14, %c0_15] : memref<128x256xbf16, #tpu.memory_space<vmem>>, vector<128x256xbf16>
    %cst_16 = arith.constant dense<0.000000e+00> : vector<16x256xf32>
    %24 = tpu.matmul %22, %23, %cst_16 {dimension_numbers = #tpu.dot_dimension_numbers<[1], [0], [0], [1], [0, 0, 1, 1], [], []>} : vector<16x128xbf16>, vector<128x256xbf16>, vector<16x256xf32> -> vector<16x256xf32>
    %c0_17 = arith.constant 0 : index
    %c0_18 = arith.constant 0 : index
    %25 = vector.load %arg8[%c0_17, %c0_18] : memref<1x256xf32, #tpu.memory_space<vmem>>, vector<1x256xf32>
    %26 = vector.broadcast %25 : vector<1x256xf32> to vector<16x256xf32>
    %27 = arith.addf %24, %26 : vector<16x256xf32>
    %cst_19 = arith.constant 0.000000e+00 : f32
    %28 = vector.broadcast %cst_19 : f32 to vector<16x256xf32>
    %29 = arith.maximumf %27, %28 : vector<16x256xf32>
    %30 = arith.truncf %29 : vector<16x256xf32> to vector<16x256xbf16>
    %c0_20 = arith.constant 0 : index
    %c0_21 = arith.constant 0 : index
    %31 = vector.load %arg9[%c0_20, %c0_21] : memref<256x256xbf16, #tpu.memory_space<vmem>>, vector<256x256xbf16>
    %cst_22 = arith.constant dense<0.000000e+00> : vector<16x256xf32>
    %32 = tpu.matmul %30, %31, %cst_22 {dimension_numbers = #tpu.dot_dimension_numbers<[1], [0], [0], [1], [0, 0, 1, 1], [], []>} : vector<16x256xbf16>, vector<256x256xbf16>, vector<16x256xf32> -> vector<16x256xf32>
    %c0_23 = arith.constant 0 : index
    %c0_24 = arith.constant 0 : index
    %33 = vector.load %arg10[%c0_23, %c0_24] : memref<1x256xf32, #tpu.memory_space<vmem>>, vector<1x256xf32>
    %34 = vector.broadcast %33 : vector<1x256xf32> to vector<16x256xf32>
    %35 = arith.addf %32, %34 : vector<16x256xf32>
    %36 = arith.negf %35 : vector<16x256xf32>
    %37 = math.exp %36 : vector<16x256xf32>
    %cst_25 = arith.constant 1.000000e+00 : f32
    %38 = vector.broadcast %cst_25 : f32 to vector<16x256xf32>
    %39 = arith.addf %38, %37 : vector<16x256xf32>
    %40 = arith.divf %38, %39 : vector<16x256xf32>
    %c0_26 = arith.constant 0 : index
    %c0_27 = arith.constant 0 : index
    %41 = vector.load %arg11[%c0_26, %c0_27] : memref<16x256xf32, #tpu.memory_space<vmem>>, vector<16x256xf32>
    tpu.vector_store %arg11[%c0_26, %c0_27], %40 {strides = array<i32>} : memref<16x256xf32, #tpu.memory_space<vmem>>, vector<16x256xf32>,
    %c0_28 = arith.constant 0 : index
    %c0_29 = arith.constant 0 : index
    %42 = vector.load %arg12[%c0_28, %c0_29] : memref<16x256xf32, #tpu.memory_space<vmem>>, vector<16x256xf32>
    tpu.vector_store %arg12[%c0_28, %c0_29], %13 {strides = array<i32>} : memref<16x256xf32, #tpu.memory_space<vmem>>, vector<16x256xf32>,
    return
  }
  func.func @transform_0(%arg0: i32) -> (i32, i32) {
    %c0_i32 = arith.constant 0 : i32
    %c0_i32_0 = arith.constant 0 : i32
    return %arg0, %c0_i32 : i32, i32
  }
  func.func @transform_1(%arg0: i32) -> (i32, i32) {
    %c0_i32 = arith.constant 0 : i32
    %c0_i32_0 = arith.constant 0 : i32
    return %arg0, %c0_i32 : i32, i32
  }
  func.func @transform_2(%arg0: i32) -> (i32, i32) {
    %c0_i32 = arith.constant 0 : i32
    %c0_i32_0 = arith.constant 0 : i32
    %c0_i32_1 = arith.constant 0 : i32
    return %c0_i32, %c0_i32_0 : i32, i32
  }
  func.func @transform_3(%arg0: i32) -> (i32, i32) {
    %c0_i32 = arith.constant 0 : i32
    %c0_i32_0 = arith.constant 0 : i32
    %c0_i32_1 = arith.constant 0 : i32
    return %c0_i32, %c0_i32_0 : i32, i32
  }
  func.func @transform_4(%arg0: i32) -> (i32, i32) {
    %c0_i32 = arith.constant 0 : i32
    %c0_i32_0 = arith.constant 0 : i32
    %c0_i32_1 = arith.constant 0 : i32
    return %c0_i32, %c0_i32_0 : i32, i32
  }
  func.func @transform_5(%arg0: i32) -> (i32, i32) {
    %c0_i32 = arith.constant 0 : i32
    %c0_i32_0 = arith.constant 0 : i32
    %c0_i32_1 = arith.constant 0 : i32
    return %c0_i32, %c0_i32_0 : i32, i32
  }
  func.func @transform_6(%arg0: i32) -> (i32, i32) {
    %c0_i32 = arith.constant 0 : i32
    %c0_i32_0 = arith.constant 0 : i32
    %c0_i32_1 = arith.constant 0 : i32
    return %c0_i32, %c0_i32_0 : i32, i32
  }
  func.func @transform_7(%arg0: i32) -> (i32, i32) {
    %c0_i32 = arith.constant 0 : i32
    %c0_i32_0 = arith.constant 0 : i32
    %c0_i32_1 = arith.constant 0 : i32
    return %c0_i32, %c0_i32_0 : i32, i32
  }
  func.func @transform_8(%arg0: i32) -> (i32, i32) {
    %c0_i32 = arith.constant 0 : i32
    %c0_i32_0 = arith.constant 0 : i32
    %c0_i32_1 = arith.constant 0 : i32
    return %c0_i32, %c0_i32_0 : i32, i32
  }
  func.func @transform_9(%arg0: i32) -> (i32, i32) {
    %c0_i32 = arith.constant 0 : i32
    %c0_i32_0 = arith.constant 0 : i32
    %c0_i32_1 = arith.constant 0 : i32
    return %c0_i32, %c0_i32_0 : i32, i32
  }
  func.func @transform_10(%arg0: i32) -> (i32, i32) {
    %c0_i32 = arith.constant 0 : i32
    %c0_i32_0 = arith.constant 0 : i32
    return %arg0, %c0_i32 : i32, i32
  }
  func.func @transform_11(%arg0: i32) -> (i32, i32) {
    %c0_i32 = arith.constant 0 : i32
    %c0_i32_0 = arith.constant 0 : i32
    return %arg0, %c0_i32 : i32, i32
  }
}

</mosaic_0001>

<llo_original>
// kernel: _run_kernel.1
$region0: #{_run_kernel.1}
  #allocation0 [shape = 'u32[]', space=smem, size = 0x4, offset = 0x4, fixed_abs, tag = 'smem constant byte address 0x4 - core index']
  #allocation1 [shape = 'u32[144,128]{1,0:T(1,128)}', space=vmem, size = 0x12000, scoped, tag = 'internal scratch']
  %s0 = inlined_call_operand.vmem [shape: bf16[16,256], index: 0, kind: input, shape index: {}]
  %s1 = inlined_call_operand.vmem [shape: f32[16,128], index: 1, kind: input, shape index: {}]
  %s2 = inlined_call_operand.vmem [shape: bf16[256,256], index: 2, kind: input, shape index: {}]
  %s3 = inlined_call_operand.vmem [shape: f32[1,256], index: 3, kind: input, shape index: {}]
  %s4 = inlined_call_operand.vmem [shape: bf16[256,256], index: 4, kind: input, shape index: {}]
  %s5 = inlined_call_operand.vmem [shape: f32[1,256], index: 5, kind: input, shape index: {}]
  %s6 = inlined_call_operand.vmem [shape: bf16[128,256], index: 6, kind: input, shape index: {}]
  %s7 = inlined_call_operand.vmem [shape: f32[1,256], index: 7, kind: input, shape index: {}]
  %s8 = inlined_call_operand.vmem [shape: bf16[256,256], index: 8, kind: input, shape index: {}]
  %s9 = inlined_call_operand.vmem [shape: f32[1,256], index: 9, kind: input, shape index: {}]
  %s10 = inlined_call_operand.hbm [shape: f32[16,256], index: 10, kind: output, shape index: {0}]
  %s11 = inlined_call_operand.vmem [shape: f32[16,256], index: 11, kind: output, shape index: {1}]
  %12 = xla_tuple %s10, %s11
  %s13 = sld [smem:[#allocation0]]
  $region58: #{_run_kernel.1} parent=0
    _
  %s15 = ssub.s32 1, %s13
  %s16 = scalar_select 0, %s15, %s13
  $region1: #{_run_kernel.1} parent=0
    #allocation2 [shape = 'u8[16384]{0}', space=vmem, size = 0x4000, scoped, tag = 'output window, operand 0, single buffered']
    #allocation3 [shape = 's32[1]{0}', space=sflag, size = 0x4, scoped, tag = 'scoped memory for _run_kernel.1']
    %17 = vsyncpa [#allocation3], 0
    // Predicated region
    $region2: #{_run_kernel.1} parent=1 // pred_check
      _
    $region3: #{_run_kernel.1} parent=1 // pred_check_branch
      %19 = sbr.rel (0) target = $region5
    $region4: #{_run_kernel.1} parent=1 // pred_region
      _
    $region5: #{_run_kernel.1} parent=1 // pred_fallthru
      _
    // Predicated region
    $region6: #{_run_kernel.1} parent=1 // pred_check
      _
    $region7: #{_run_kernel.1} parent=1 // pred_check_branch
      %21 = sbr.rel (0) target = $region9
    $region8: #{_run_kernel.1} parent=1 // pred_region
      _
    $region9: #{_run_kernel.1} parent=1 // pred_fallthru
      _
    // Predicated region
    $region10: #{_run_kernel.1} parent=1 // pred_check
      _
    $region11: #{_run_kernel.1} parent=1 // pred_check_branch
      %23 = sbr.rel (0) target = $region13
    $region12: #{_run_kernel.1} parent=1 // pred_region
      _
    $region13: #{_run_kernel.1} parent=1 // pred_fallthru
      _
    // Predicated region
    $region14: #{_run_kernel.1} parent=1 // pred_check
      _
    $region15: #{_run_kernel.1} parent=1 // pred_check_branch
      %25 = sbr.rel (0) target = $region17
    $region16: #{_run_kernel.1} parent=1 // pred_region
      _
    $region17: #{_run_kernel.1} parent=1 // pred_fallthru
      _
    // Predicated region
    $region18: #{_run_kernel.1} parent=1 // pred_check
      _
    $region19: #{_run_kernel.1} parent=1 // pred_check_branch
      %27 = sbr.rel (0) target = $region21
    $region20: #{_run_kernel.1} parent=1 // pred_region
      _
    $region21: #{_run_kernel.1} parent=1 // pred_fallthru
      _
    // Predicated region
    $region22: #{_run_kernel.1} parent=1 // pred_check
      _
    $region23: #{_run_kernel.1} parent=1 // pred_check_branch
      %29 = sbr.rel (0) target = $region25
    $region24: #{_run_kernel.1} parent=1 // pred_region
      _
    $region25: #{_run_kernel.1} parent=1 // pred_fallthru
      _
    // Predicated region
    $region26: #{_run_kernel.1} parent=1 // pred_check
      _
    $region27: #{_run_kernel.1} parent=1 // pred_check_branch
      %31 = sbr.rel (0) target = $region29
    $region28: #{_run_kernel.1} parent=1 // pred_region
      _
    $region29: #{_run_kernel.1} parent=1 // pred_fallthru
      _
    // Predicated region
    $region30: #{_run_kernel.1} parent=1 // pred_check
      _
    $region31: #{_run_kernel.1} parent=1 // pred_check_branch
      %33 = sbr.rel (0) target = $region33
    $region32: #{_run_kernel.1} parent=1 // pred_region
      _
    $region33: #{_run_kernel.1} parent=1 // pred_fallthru
      _
    // Predicated region
    $region34: #{_run_kernel.1} parent=1 // pred_check
      _
    $region35: #{_run_kernel.1} parent=1 // pred_check_branch
      %35 = sbr.rel (0) target = $region37
    $region36: #{_run_kernel.1} parent=1 // pred_region
      _
    $region37: #{_run_kernel.1} parent=1 // pred_fallthru
      _
    // Predicated region
    $region38: #{_run_kernel.1} parent=1 // pred_check
      _
    $region39: #{_run_kernel.1} parent=1 // pred_check_branch
      %37 = sbr.rel (0) target = $region41
    $region40: #{_run_kernel.1} parent=1 // pred_region
      _
    $region41: #{_run_kernel.1} parent=1 // pred_fallthru
      _
    %v39 = vld [vmem:[%s0] sm:$0xff]
    %v40 = vld [vmem:[%s0 + $0x8] sm:$0xff]
    %v41 = vld [vmem:[%s2] sm:$0xff]
    %v42 = vld [vmem:[%s2 + $0x8] sm:$0xff]
    %v43 = vld [vmem:[%s2 + $0x10] sm:$0xff]
    %v44 = vld [vmem:[%s2 + $0x18] sm:$0xff]
    %v45 = vld [vmem:[%s2 + $0x20] sm:$0xff]
    %v46 = vld [vmem:[%s2 + $0x28] sm:$0xff]
    %v47 = vld [vmem:[%s2 + $0x30] sm:$0xff]
    %v48 = vld [vmem:[%s2 + $0x38] sm:$0xff]
    %v49 = vld [vmem:[%s2 + $0x40] sm:$0xff]
    %v50 = vld [vmem:[%s2 + $0x48] sm:$0xff]
    %v51 = vld [vmem:[%s2 + $0x50] sm:$0xff]
    %v52 = vld [vmem:[%s2 + $0x58] sm:$0xff]
    %v53 = vld [vmem:[%s2 + $0x60] sm:$0xff]
    %v54 = vld [vmem:[%s2 + $0x68] sm:$0xff]
    %v55 = vld [vmem:[%s2 + $0x70] sm:$0xff]
    %v56 = vld [vmem:[%s2 + $0x78] sm:$0xff]
    %v57 = vld [vmem:[%s2 + $0x80] sm:$0xff]
    %v58 = vld [vmem:[%s2 + $0x88] sm:$0xff]
    %v59 = vld [vmem:[%s2 + $0x90] sm:$0xff]
    %v60 = vld [vmem:[%s2 + $0x98] sm:$0xff]
    %v61 = vld [vmem:[%s2 + $0xa0] sm:$0xff]
    %v62 = vld [vmem:[%s2 + $0xa8] sm:$0xff]
    %v63 = vld [vmem:[%s2 + $0xb0] sm:$0xff]
    %v64 = vld [vmem:[%s2 + $0xb8] sm:$0xff]
    %v65 = vld [vmem:[%s2 + $0xc0] sm:$0xff]
    %v66 = vld [vmem:[%s2 + $0xc8] sm:$0xff]
    %v67 = vld [vmem:[%s2 + $0xd0] sm:$0xff]
    %v68 = vld [vmem:[%s2 + $0xd8] sm:$0xff]
    %v69 = vld [vmem:[%s2 + $0xe0] sm:$0xff]
    %v70 = vld [vmem:[%s2 + $0xe8] sm:$0xff]
    %v71 = vld [vmem:[%s2 + $0xf0] sm:$0xff]
    %v72 = vld [vmem:[%s2 + $0xf8] sm:$0xff]
    %v73 = vld [vmem:[%s3] sm:$0x3]
    %v75 = vlaneseq
    %v76 = vshrl.u32 %v75, 7
    %v77 = vsub.s32 0, %v76
    %v78 = vrot.slane %v73, %v77
    %v79 = vlaneseq
    %v80 = vshrl.u32 %v79, 7
    %v81 = vsub.s32 1, %v80
    %v82 = vrot.slane %v73, %v81
    %v87 = vunpack.c.l.b16 %v39
    %v88 = vunpack.c.h.b16 %v39
    %v89 = vunpack.c.l.b16 %v40
    %v90 = vunpack.c.h.b16 %v40
    %v91 = vpack.c.b16 %v89, %v87
    %v92 = vpack.c.b16 %v90, %v88
    %v127 = vunpack.c.l.b16 %v41
    %v128 = vunpack.c.h.b16 %v41
    %v129 = vunpack.c.l.b16 %v42
    %v130 = vunpack.c.h.b16 %v42
    %v131 = vunpack.c.l.b16 %v43
    %v132 = vunpack.c.h.b16 %v43
    %v133 = vunpack.c.l.b16 %v44
    %v134 = vunpack.c.h.b16 %v44
    %v135 = vunpack.c.l.b16 %v45
    %v136 = vunpack.c.h.b16 %v45
    %v137 = vunpack.c.l.b16 %v46
    %v138 = vunpack.c.h.b16 %v46
    %v139 = vunpack.c.l.b16 %v47
    %v140 = vunpack.c.h.b16 %v47
    %v141 = vunpack.c.l.b16 %v48
    %v142 = vunpack.c.h.b16 %v48
    %v143 = vunpack.c.l.b16 %v49
    %v144 = vunpack.c.h.b16 %v49
    %v145 = vunpack.c.l.b16 %v50
    %v146 = vunpack.c.h.b16 %v50
    %v147 = vunpack.c.l.b16 %v51
    %v148 = vunpack.c.h.b16 %v51
    %v149 = vunpack.c.l.b16 %v52
    %v150 = vunpack.c.h.b16 %v52
    %v151 = vunpack.c.l.b16 %v53
    %v152 = vunpack.c.h.b16 %v53
    %v153 = vunpack.c.l.b16 %v54
    %v154 = vunpack.c.h.b16 %v54
    %v155 = vunpack.c.l.b16 %v55
    %v156 = vunpack.c.h.b16 %v55
    %v157 = vunpack.c.l.b16 %v56
    %v158 = vunpack.c.h.b16 %v56
    %v159 = vunpack.c.l.b16 %v57
    %v160 = vunpack.c.h.b16 %v57
    %v161 = vunpack.c.l.b16 %v58
    %v162 = vunpack.c.h.b16 %v58
    %v163 = vunpack.c.l.b16 %v59
    %v164 = vunpack.c.h.b16 %v59
    %v165 = vunpack.c.l.b16 %v60
    %v166 = vunpack.c.h.b16 %v60
    %v167 = vunpack.c.l.b16 %v61
    %v168 = vunpack.c.h.b16 %v61
    %v169 = vunpack.c.l.b16 %v62
    %v170 = vunpack.c.h.b16 %v62
    %v171 = vunpack.c.l.b16 %v63
    %v172 = vunpack.c.h.b16 %v63
    %v173 = vunpack.c.l.b16 %v64
    %v174 = vunpack.c.h.b16 %v64
    %v175 = vunpack.c.l.b16 %v65
    %v176 = vunpack.c.h.b16 %v65
    %v177 = vunpack.c.l.b16 %v66
    %v178 = vunpack.c.h.b16 %v66
    %v179 = vunpack.c.l.b16 %v67
    %v180 = vunpack.c.h.b16 %v67
    %v181 = vunpack.c.l.b16 %v68
    %v182 = vunpack.c.h.b16 %v68
    %v183 = vunpack.c.l.b16 %v69
    %v184 = vunpack.c.h.b16 %v69
    %v185 = vunpack.c.l.b16 %v70
    %v186 = vunpack.c.h.b16 %v70
    %v187 = vunpack.c.l.b16 %v71
    %v188 = vunpack.c.h.b16 %v71
    %v189 = vunpack.c.l.b16 %v72
    %v190 = vunpack.c.h.b16 %v72
    %v191 = vpack.c.b16 %v129, %v127
    %v192 = vpack.c.b16 %v130, %v128
    %v193 = vpack.c.b16 %v133, %v131
    %v194 = vpack.c.b16 %v134, %v132
    %v195 = vpack.c.b16 %v137, %v135
    %v196 = vpack.c.b16 %v138, %v136
    %v197 = vpack.c.b16 %v141, %v139
    %v198 = vpack.c.b16 %v142, %v140
    %v199 = vpack.c.b16 %v145, %v143
    %v200 = vpack.c.b16 %v146, %v144
    %v201 = vpack.c.b16 %v149, %v147
    %v202 = vpack.c.b16 %v150, %v148
    %v203 = vpack.c.b16 %v153, %v151
    %v204 = vpack.c.b16 %v154, %v152
    %v205 = vpack.c.b16 %v157, %v155
    %v206 = vpack.c.b16 %v158, %v156
    %v207 = vpack.c.b16 %v161, %v159
    %v208 = vpack.c.b16 %v162, %v160
    %v209 = vpack.c.b16 %v165, %v163
    %v210 = vpack.c.b16 %v166, %v164
    %v211 = vpack.c.b16 %v169, %v167
    %v212 = vpack.c.b16 %v170, %v168
    %v213 = vpack.c.b16 %v173, %v171
    %v214 = vpack.c.b16 %v174, %v172
    %v215 = vpack.c.b16 %v177, %v175
    %v216 = vpack.c.b16 %v178, %v176
    %v217 = vpack.c.b16 %v181, %v179
    %v218 = vpack.c.b16 %v182, %v180
    %v219 = vpack.c.b16 %v185, %v183
    %v220 = vpack.c.b16 %v186, %v184
    %v221 = vpack.c.b16 %v189, %v187
    %v222 = vpack.c.b16 %v190, %v188
    %255 = vmatprep.subr.bf16.mxu0 %v192
    %256 = vmatpush1.bf16.msra.mxu0 %v191
    %257 = vmatprep.subr.bf16.mxu0 %v194
    %258 = vmatpush1.bf16.msra.mxu0 %v193
    %259 = vmatprep.subr.bf16.mxu0 %v196
    %260 = vmatpush1.bf16.msra.mxu0 %v195
    %261 = vmatprep.subr.bf16.mxu0 %v198
    %262 = vmatpush1.bf16.msra.mxu0 %v197
    %263 = vmatprep.subr.bf16.mxu0 %v200
    %264 = vmatpush1.bf16.msra.mxu0 %v199
    %265 = vmatprep.subr.bf16.mxu0 %v202
    %266 = vmatpush1.bf16.msra.mxu0 %v201
    %267 = vmatprep.subr.bf16.mxu0 %v204
    %268 = vmatpush1.bf16.msra.mxu0 %v203
    %269 = vmatprep.subr.bf16.mxu0 %v206
    %270 = vmatpush1.bf16.msra.mxu0 %v205
    %271 = vmatprep.subr.bf16.mxu0 %v208
    %272 = vmatpush1.bf16.msra.mxu0 %v207
    %273 = vmatprep.subr.bf16.mxu0 %v210
    %274 = vmatpush1.bf16.msra.mxu0 %v209
    %275 = vmatprep.subr.bf16.mxu0 %v212
    %276 = vmatpush1.bf16.msra.mxu0 %v211
    %277 = vmatprep.subr.bf16.mxu0 %v214
    %278 = vmatpush1.bf16.msra.mxu0 %v213
    %279 = vmatprep.subr.bf16.mxu0 %v216
    %280 = vmatpush1.bf16.msra.mxu0 %v215
    %281 = vmatprep.subr.bf16.mxu0 %v218
    %282 = vmatpush1.bf16.msra.mxu0 %v217
    %283 = vmatprep.subr.bf16.mxu0 %v220
    %284 = vmatpush1.bf16.msra.mxu0 %v219
    %285 = vmatprep.subr.bf16.mxu0 %v222
    %286 = vmatpush1.bf16.msra.mxu0 %v221
    %287 = vmatprep.mubr.bf16.mxu0 %v92
    %288 = vmatmul.mubr.bf16.gmra.mrb[0].mxu0 %v91
    %v289 = vpop.f32.mrb[0].mxu0
    %v290 = vadd.f32 %v78, %v289
    %v291 = vpop.f32.mrb[0].mxu0
    %v292 = vadd.f32 %v82, %v291
    %v293 = vpop.f32.mrb[0].mxu0
    %v294 = vadd.f32 %v78, %v293
    %v295 = vpop.f32.mrb[0].mxu0
    %v296 = vadd.f32 %v82, %v295
    %297 = vdwg.mxu0
    %v298 = vmax.f32 %v290, 0.0
    %v299 = vmax.f32 %v292, 0.0
    %v300 = vmax.f32 %v294, 0.0
    %v301 = vmax.f32 %v296, 0.0
    %v302 = vpack.c.bf16 %v300, %v298
    %v303 = vpack.c.bf16 %v301, %v299
    %v304 = vld [vmem:[%s4] sm:$0xff]
    %v305 = vld [vmem:[%s4 + $0x8] sm:$0xff]
    %v306 = vld [vmem:[%s4 + $0x10] sm:$0xff]
    %v307 = vld [vmem:[%s4 + $0x18] sm:$0xff]
    %v308 = vld [vmem:[%s4 + $0x20] sm:$0xff]
    %v309 = vld [vmem:[%s4 + $0x28] sm:$0xff]
    %v310 = vld [vmem:[%s4 + $0x30] sm:$0xff]
    %v311 = vld [vmem:[%s4 + $0x38] sm:$0xff]
    %v312 = vld [vmem:[%s4 + $0x40] sm:$0xff]
    %v313 = vld [vmem:[%s4 + $0x48] sm:$0xff]
    %v314 = vld [vmem:[%s4 + $0x50] sm:$0xff]
    %v315 = vld [vmem:[%s4 + $0x58] sm:$0xff]
    %v316 = vld [vmem:[%s4 + $0x60] sm:$0xff]
    %v317 = vld [vmem:[%s4 + $0x68] sm:$0xff]
    %v318 = vld [vmem:[%s4 + $0x70] sm:$0xff]
    %v319 = vld [vmem:[%s4 + $0x78] sm:$0xff]
    %v320 = vld [vmem:[%s4 + $0x80] sm:$0xff]
    %v321 = vld [vmem:[%s4 + $0x88] sm:$0xff]
    %v322 = vld [vmem:[%s4 + $0x90] sm:$0xff]
    %v323 = vld [vmem:[%s4 + $0x98] sm:$0xff]
    %v324 = vld [vmem:[%s4 + $0xa0] sm:$0xff]
    %v325 = vld [vmem:[%s4 + $0xa8] sm:$0xff]
    %v326 = vld [vmem:[%s4 + $0xb0] sm:$0xff]
    %v327 = vld [vmem:[%s4 + $0xb8] sm:$0xff]
    %v328 = vld [vmem:[%s4 + $0xc0] sm:$0xff]
    %v329 = vld [vmem:[%s4 + $0xc8] sm:$0xff]
    %v330 = vld [vmem:[%s4 + $0xd0] sm:$0xff]
    %v331 = vld [vmem:[%s4 + $0xd8] sm:$0xff]
    %v332 = vld [vmem:[%s4 + $0xe0] sm:$0xff]
    %v333 = vld [vmem:[%s4 + $0xe8] sm:$0xff]
    %v334 = vld [vmem:[%s4 + $0xf0] sm:$0xff]
    %v335 = vld [vmem:[%s4 + $0xf8] sm:$0xff]
    %v336 = vld [vmem:[%s5] sm:$0x3]
    %v338 = vlaneseq
    %v339 = vshrl.u32 %v338, 7
    %v340 = vsub.s32 0, %v339
    %v341 = vrot.slane %v336, %v340
    %v342 = vlaneseq
    %v343 = vshrl.u32 %v342, 7
    %v344 = vsub.s32 1, %v343
    %v345 = vrot.slane %v336, %v344
    %v380 = vunpack.c.l.b16 %v304
    %v381 = vunpack.c.h.b16 %v304
    %v382 = vunpack.c.l.b16 %v305
    %v383 = vunpack.c.h.b16 %v305
    %v384 = vunpack.c.l.b16 %v306
    %v385 = vunpack.c.h.b16 %v306
    %v386 = vunpack.c.l.b16 %v307
    %v387 = vunpack.c.h.b16 %v307
    %v388 = vunpack.c.l.b16 %v308
    %v389 = vunpack.c.h.b16 %v308
    %v390 = vunpack.c.l.b16 %v309
    %v391 = vunpack.c.h.b16 %v309
    %v392 = vunpack.c.l.b16 %v310
    %v393 = vunpack.c.h.b16 %v310
    %v394 = vunpack.c.l.b16 %v311
    %v395 = vunpack.c.h.b16 %v311
    %v396 = vunpack.c.l.b16 %v312
    %v397 = vunpack.c.h.b16 %v312
    %v398 = vunpack.c.l.b16 %v313
    %v399 = vunpack.c.h.b16 %v313
    %v400 = vunpack.c.l.b16 %v314
    %v401 = vunpack.c.h.b16 %v314
    %v402 = vunpack.c.l.b16 %v315
    %v403 = vunpack.c.h.b16 %v315
    %v404 = vunpack.c.l.b16 %v316
    %v405 = vunpack.c.h.b16 %v316
    %v406 = vunpack.c.l.b16 %v317
    %v407 = vunpack.c.h.b16 %v317
    %v408 = vunpack.c.l.b16 %v318
    %v409 = vunpack.c.h.b16 %v318
    %v410 = vunpack.c.l.b16 %v319
    %v411 = vunpack.c.h.b16 %v319
    %v412 = vunpack.c.l.b16 %v320
    %v413 = vunpack.c.h.b16 %v320
    %v414 = vunpack.c.l.b16 %v321
    %v415 = vunpack.c.h.b16 %v321
    %v416 = vunpack.c.l.b16 %v322
    %v417 = vunpack.c.h.b16 %v322
    %v418 = vunpack.c.l.b16 %v323
    %v419 = vunpack.c.h.b16 %v323
    %v420 = vunpack.c.l.b16 %v324
    %v421 = vunpack.c.h.b16 %v324
    %v422 = vunpack.c.l.b16 %v325
    %v423 = vunpack.c.h.b16 %v325
    %v424 = vunpack.c.l.b16 %v326
    %v425 = vunpack.c.h.b16 %v326
    %v426 = vunpack.c.l.b16 %v327
    %v427 = vunpack.c.h.b16 %v327
    %v428 = vunpack.c.l.b16 %v328
    %v429 = vunpack.c.h.b16 %v328
    %v430 = vunpack.c.l.b16 %v329
    %v431 = vunpack.c.h.b16 %v329
    %v432 = vunpack.c.l.b16 %v330
    %v433 = vunpack.c.h.b16 %v330
    %v434 = vunpack.c.l.b16 %v331
    %v435 = vunpack.c.h.b16 %v331
    %v436 = vunpack.c.l.b16 %v332
    %v437 = vunpack.c.h.b16 %v332
    %v438 = vunpack.c.l.b16 %v333
    %v439 = vunpack.c.h.b16 %v333
    %v440 = vunpack.c.l.b16 %v334
    %v441 = vunpack.c.h.b16 %v334
    %v442 = vunpack.c.l.b16 %v335
    %v443 = vunpack.c.h.b16 %v335
    %v444 = vpack.c.b16 %v382, %v380
    %v445 = vpack.c.b16 %v383, %v381
    %v446 = vpack.c.b16 %v386, %v384
    %v447 = vpack.c.b16 %v387, %v385
    %v448 = vpack.c.b16 %v390, %v388
    %v449 = vpack.c.b16 %v391, %v389
    %v450 = vpack.c.b16 %v394, %v392
    %v451 = vpack.c.b16 %v395, %v393
    %v452 = vpack.c.b16 %v398, %v396
    %v453 = vpack.c.b16 %v399, %v397
    %v454 = vpack.c.b16 %v402, %v400
    %v455 = vpack.c.b16 %v403, %v401
    %v456 = vpack.c.b16 %v406, %v404
    %v457 = vpack.c.b16 %v407, %v405
    %v458 = vpack.c.b16 %v410, %v408
    %v459 = vpack.c.b16 %v411, %v409
    %v460 = vpack.c.b16 %v414, %v412
    %v461 = vpack.c.b16 %v415, %v413
    %v462 = vpack.c.b16 %v418, %v416
    %v463 = vpack.c.b16 %v419, %v417
    %v464 = vpack.c.b16 %v422, %v420
    %v465 = vpack.c.b16 %v423, %v421
    %v466 = vpack.c.b16 %v426, %v424
    %v467 = vpack.c.b16 %v427, %v425
    %v468 = vpack.c.b16 %v430, %v428
    %v469 = vpack.c.b16 %v431, %v429
    %v470 = vpack.c.b16 %v434, %v432
    %v471 = vpack.c.b16 %v435, %v433
    %v472 = vpack.c.b16 %v438, %v436
    %v473 = vpack.c.b16 %v439, %v437
    %v474 = vpack.c.b16 %v442, %v440
    %v475 = vpack.c.b16 %v443, %v441
    %508 = vmatprep.subr.bf16.mxu0 %v445
    %509 = vmatpush1.bf16.msra.mxu0 %v444
    %510 = vmatprep.subr.bf16.mxu0 %v447
    %511 = vmatpush1.bf16.msra.mxu0 %v446
    %512 = vmatprep.subr.bf16.mxu0 %v449
    %513 = vmatpush1.bf16.msra.mxu0 %v448
    %514 = vmatprep.subr.bf16.mxu0 %v451
    %515 = vmatpush1.bf16.msra.mxu0 %v450
    %516 = vmatprep.subr.bf16.mxu0 %v453
    %517 = vmatpush1.bf16.msra.mxu0 %v452
    %518 = vmatprep.subr.bf16.mxu0 %v455
    %519 = vmatpush1.bf16.msra.mxu0 %v454
    %520 = vmatprep.subr.bf16.mxu0 %v457
    %521 = vmatpush1.bf16.msra.mxu0 %v456
    %522 = vmatprep.subr.bf16.mxu0 %v459
    %523 = vmatpush1.bf16.msra.mxu0 %v458
    %524 = vmatprep.subr.bf16.mxu0 %v461
    %525 = vmatpush1.bf16.msra.mxu0 %v460
    %526 = vmatprep.subr.bf16.mxu0 %v463
    %527 = vmatpush1.bf16.msra.mxu0 %v462
    %528 = vmatprep.subr.bf16.mxu0 %v465
    %529 = vmatpush1.bf16.msra.mxu0 %v464
    %530 = vmatprep.subr.bf16.mxu0 %v467
    %531 = vmatpush1.bf16.msra.mxu0 %v466
    %532 = vmatprep.subr.bf16.mxu0 %v469
    %533 = vmatpush1.bf16.msra.mxu0 %v468
    %534 = vmatprep.subr.bf16.mxu0 %v471
    %535 = vmatpush1.bf16.msra.mxu0 %v470
    %536 = vmatprep.subr.bf16.mxu0 %v473
    %537 = vmatpush1.bf16.msra.mxu0 %v472
    %538 = vmatprep.subr.bf16.mxu0 %v475
    %539 = vmatpush1.bf16.msra.mxu0 %v474
    %540 = vmatprep.mubr.bf16.mxu0 %v303
    %541 = vmatmul.mubr.bf16.gmra.mrb[0].mxu0 %v302
    %v542 = vpop.f32.mrb[0].mxu0
    %v543 = vadd.f32 %v341, %v542
    %v544 = vpop.f32.mrb[0].mxu0
    %v545 = vadd.f32 %v345, %v544
    %v546 = vpop.f32.mrb[0].mxu0
    %v547 = vadd.f32 %v341, %v546
    %v548 = vpop.f32.mrb[0].mxu0
    %v549 = vadd.f32 %v345, %v548
    %550 = vdwg.mxu0
    %v551 = vmul.f32 %v545, 0.5
    %v552 = vmul.f32 %v549, 0.5
    %v553 = vmul.f32 %v551, 1.442695
    %v554 = vpow.pop %v553
    %v555 = vmul.f32 %v552, 1.442695
    %v556 = vpow.pop %v555
    %v557 = vld [vmem:[%s1] sm:$0xff]
    %v558 = vld [vmem:[%s1 + $0x8] sm:$0xff]
    %v559 = vmul.f32 %v554, %v557
    %v560 = vmul.f32 %v556, %v558
    %v561 = vadd.f32 %v543, %v559
    %v562 = vadd.f32 %v547, %v560
    %v563 = vpack.c.bf16 %v562, %v561
    %v564 = vld [vmem:[%s6] sm:$0xff]
    %v565 = vld [vmem:[%s6 + $0x8] sm:$0xff]
    %v566 = vld [vmem:[%s6 + $0x10] sm:$0xff]
    %v567 = vld [vmem:[%s6 + $0x18] sm:$0xff]
    %v568 = vld [vmem:[%s6 + $0x20] sm:$0xff]
    %v569 = vld [vmem:[%s6 + $0x28] sm:$0xff]
    %v570 = vld [vmem:[%s6 + $0x30] sm:$0xff]
    %v571 = vld [vmem:[%s6 + $0x38] sm:$0xff]
    %v572 = vld [vmem:[%s6 + $0x40] sm:$0xff]
    %v573 = vld [vmem:[%s6 + $0x48] sm:$0xff]
    %v574 = vld [vmem:[%s6 + $0x50] sm:$0xff]
    %v575 = vld [vmem:[%s6 + $0x58] sm:$0xff]
    %v576 = vld [vmem:[%s6 + $0x60] sm:$0xff]
    %v577 = vld [vmem:[%s6 + $0x68] sm:$0xff]
    %v578 = vld [vmem:[%s6 + $0x70] sm:$0xff]
    %v579 = vld [vmem:[%s6 + $0x78] sm:$0xff]
    %v580 = vld [vmem:[%s7] sm:$0x3]
    %v582 = vlaneseq
    %v583 = vshrl.u32 %v582, 7
    %v584 = vsub.s32 0, %v583
    %v585 = vrot.slane %v580, %v584
    %v586 = vlaneseq
    %v587 = vshrl.u32 %v586, 7
    %v588 = vsub.s32 1, %v587
    %v589 = vrot.slane %v580, %v588
    %v608 = vunpack.c.l.b16 %v564
    %v609 = vunpack.c.h.b16 %v564
    %v610 = vunpack.c.l.b16 %v565
    %v611 = vunpack.c.h.b16 %v565
    %v612 = vunpack.c.l.b16 %v566
    %v613 = vunpack.c.h.b16 %v566
    %v614 = vunpack.c.l.b16 %v567
    %v615 = vunpack.c.h.b16 %v567
    %v616 = vunpack.c.l.b16 %v568
    %v617 = vunpack.c.h.b16 %v568
    %v618 = vunpack.c.l.b16 %v569
    %v619 = vunpack.c.h.b16 %v569
    %v620 = vunpack.c.l.b16 %v570
    %v621 = vunpack.c.h.b16 %v570
    %v622 = vunpack.c.l.b16 %v571
    %v623 = vunpack.c.h.b16 %v571
    %v624 = vunpack.c.l.b16 %v572
    %v625 = vunpack.c.h.b16 %v572
    %v626 = vunpack.c.l.b16 %v573
    %v627 = vunpack.c.h.b16 %v573
    %v628 = vunpack.c.l.b16 %v574
    %v629 = vunpack.c.h.b16 %v574
    %v630 = vunpack.c.l.b16 %v575
    %v631 = vunpack.c.h.b16 %v575
    %v632 = vunpack.c.l.b16 %v576
    %v633 = vunpack.c.h.b16 %v576
    %v634 = vunpack.c.l.b16 %v577
    %v635 = vunpack.c.h.b16 %v577
    %v636 = vunpack.c.l.b16 %v578
    %v637 = vunpack.c.h.b16 %v578
    %v638 = vunpack.c.l.b16 %v579
    %v639 = vunpack.c.h.b16 %v579
    %v640 = vpack.c.b16 %v610, %v608
    %v641 = vpack.c.b16 %v611, %v609
    %v642 = vpack.c.b16 %v614, %v612
    %v643 = vpack.c.b16 %v615, %v613
    %v644 = vpack.c.b16 %v618, %v616
    %v645 = vpack.c.b16 %v619, %v617
    %v646 = vpack.c.b16 %v622, %v620
    %v647 = vpack.c.b16 %v623, %v621
    %v648 = vpack.c.b16 %v626, %v624
    %v649 = vpack.c.b16 %v627, %v625
    %v650 = vpack.c.b16 %v630, %v628
    %v651 = vpack.c.b16 %v631, %v629
    %v652 = vpack.c.b16 %v634, %v632
    %v653 = vpack.c.b16 %v635, %v633
    %v654 = vpack.c.b16 %v638, %v636
    %v655 = vpack.c.b16 %v639, %v637
    %672 = vmatprep.subr.bf16.mxu0 %v641
    %673 = vmatpush1.bf16.msra.mxu0 %v640
    %674 = vmatprep.subr.bf16.mxu0 %v643
    %675 = vmatpush1.bf16.msra.mxu0 %v642
    %676 = vmatprep.subr.bf16.mxu0 %v645
    %677 = vmatpush1.bf16.msra.mxu0 %v644
    %678 = vmatprep.subr.bf16.mxu0 %v647
    %679 = vmatpush1.bf16.msra.mxu0 %v646
    %680 = vmatprep.subr.bf16.mxu0 %v649
    %681 = vmatpush1.bf16.msra.mxu0 %v648
    %682 = vmatprep.subr.bf16.mxu0 %v651
    %683 = vmatpush1.bf16.msra.mxu0 %v650
    %684 = vmatprep.subr.bf16.mxu0 %v653
    %685 = vmatpush1.bf16.msra.mxu0 %v652
    %686 = vmatprep.subr.bf16.mxu0 %v655
    %687 = vmatpush1.bf16.msra.mxu0 %v654
    %688 = vmatprep.subr.bf16.mxu0 0
    %689 = vmatpush1.bf16.msra.mxu0 0
    %690 = vmatprep.subr.bf16.mxu0 0
    %691 = vmatpush1.bf16.msra.mxu0 0
    %692 = vmatprep.subr.bf16.mxu0 0
    %693 = vmatpush1.bf16.msra.mxu0 0
    %694 = vmatprep.subr.bf16.mxu0 0
    %695 = vmatpush1.bf16.msra.mxu0 0
    %696 = vmatprep.subr.bf16.mxu0 0
    %697 = vmatpush1.bf16.msra.mxu0 0
    %698 = vmatprep.subr.bf16.mxu0 0
    %699 = vmatpush1.bf16.msra.mxu0 0
    %700 = vmatprep.subr.bf16.mxu0 0
    %701 = vmatpush1.bf16.msra.mxu0 0
    %702 = vmatprep.subr.bf16.mxu0 0
    %703 = vmatpush1.bf16.msra.mxu0 0
    %704 = vmatprep.mubr.bf16.mxu0 0
    %705 = vmatmul.mubr.bf16.gmra.mrb[0].mxu0 %v563
    %v706 = vpop.f32.mrb[0].mxu0
    %v707 = vadd.f32 %v585, %v706
    %v708 = vpop.f32.mrb[0].mxu0
    %v709 = vadd.f32 %v589, %v708
    %v710 = vpop.f32.mrb[0].mxu0
    %v711 = vadd.f32 %v585, %v710
    %v712 = vpop.f32.mrb[0].mxu0
    %v713 = vadd.f32 %v589, %v712
    %714 = vdwg.mxu0
    %v715 = vmax.f32 %v707, 0.0
    %v716 = vmax.f32 %v709, 0.0
    %v717 = vmax.f32 %v711, 0.0
    %v718 = vmax.f32 %v713, 0.0
    %v719 = vpack.c.bf16 %v717, %v715
    %v720 = vpack.c.bf16 %v718, %v716
    %v721 = vld [vmem:[%s8] sm:$0xff]
    %v722 = vld [vmem:[%s8 + $0x8] sm:$0xff]
    %v723 = vld [vmem:[%s8 + $0x10] sm:$0xff]
    %v724 = vld [vmem:[%s8 + $0x18] sm:$0xff]
    %v725 = vld [vmem:[%s8 + $0x20] sm:$0xff]
    %v726 = vld [vmem:[%s8 + $0x28] sm:$0xff]
    %v727 = vld [vmem:[%s8 + $0x30] sm:$0xff]
    %v728 = vld [vmem:[%s8 + $0x38] sm:$0xff]
    %v729 = vld [vmem:[%s8 + $0x40] sm:$0xff]
    %v730 = vld [vmem:[%s8 + $0x48] sm:$0xff]
    %v731 = vld [vmem:[%s8 + $0x50] sm:$0xff]
    %v732 = vld [vmem:[%s8 + $0x58] sm:$0xff]
    %v733 = vld [vmem:[%s8 + $0x60] sm:$0xff]
    %v734 = vld [vmem:[%s8 + $0x68] sm:$0xff]
    %v735 = vld [vmem:[%s8 + $0x70] sm:$0xff]
    %v736 = vld [vmem:[%s8 + $0x78] sm:$0xff]
    %v737 = vld [vmem:[%s8 + $0x80] sm:$0xff]
    %v738 = vld [vmem:[%s8 + $0x88] sm:$0xff]
    %v739 = vld [vmem:[%s8 + $0x90] sm:$0xff]
    %v740 = vld [vmem:[%s8 + $0x98] sm:$0xff]
    %v741 = vld [vmem:[%s8 + $0xa0] sm:$0xff]
    %v742 = vld [vmem:[%s8 + $0xa8] sm:$0xff]
    %v743 = vld [vmem:[%s8 + $0xb0] sm:$0xff]
    %v744 = vld [vmem:[%s8 + $0xb8] sm:$0xff]
    %v745 = vld [vmem:[%s8 + $0xc0] sm:$0xff]
    %v746 = vld [vmem:[%s8 + $0xc8] sm:$0xff]
    %v747 = vld [vmem:[%s8 + $0xd0] sm:$0xff]
    %v748 = vld [vmem:[%s8 + $0xd8] sm:$0xff]
    %v749 = vld [vmem:[%s8 + $0xe0] sm:$0xff]
    %v750 = vld [vmem:[%s8 + $0xe8] sm:$0xff]
    %v751 = vld [vmem:[%s8 + $0xf0] sm:$0xff]
    %v752 = vld [vmem:[%s8 + $0xf8] sm:$0xff]
    %v753 = vld [vmem:[%s9] sm:$0x3]
    %v755 = vlaneseq
    %v756 = vshrl.u32 %v755, 7
    %v757 = vsub.s32 0, %v756
    %v758 = vrot.slane %v753, %v757
    %v759 = vlaneseq
    %v760 = vshrl.u32 %v759, 7
    %v761 = vsub.s32 1, %v760
    %v762 = vrot.slane %v753, %v761
    %v797 = vunpack.c.l.b16 %v721
    %v798 = vunpack.c.h.b16 %v721
    %v799 = vunpack.c.l.b16 %v722
    %v800 = vunpack.c.h.b16 %v722
    %v801 = vunpack.c.l.b16 %v723
    %v802 = vunpack.c.h.b16 %v723
    %v803 = vunpack.c.l.b16 %v724
    %v804 = vunpack.c.h.b16 %v724
    %v805 = vunpack.c.l.b16 %v725
    %v806 = vunpack.c.h.b16 %v725
    %v807 = vunpack.c.l.b16 %v726
    %v808 = vunpack.c.h.b16 %v726
    %v809 = vunpack.c.l.b16 %v727
    %v810 = vunpack.c.h.b16 %v727
    %v811 = vunpack.c.l.b16 %v728
    %v812 = vunpack.c.h.b16 %v728
    %v813 = vunpack.c.l.b16 %v729
    %v814 = vunpack.c.h.b16 %v729
    %v815 = vunpack.c.l.b16 %v730
    %v816 = vunpack.c.h.b16 %v730
    %v817 = vunpack.c.l.b16 %v731
    %v818 = vunpack.c.h.b16 %v731
    %v819 = vunpack.c.l.b16 %v732
    %v820 = vunpack.c.h.b16 %v732
    %v821 = vunpack.c.l.b16 %v733
    %v822 = vunpack.c.h.b16 %v733
    %v823 = vunpack.c.l.b16 %v734
    %v824 = vunpack.c.h.b16 %v734
    %v825 = vunpack.c.l.b16 %v735
    %v826 = vunpack.c.h.b16 %v735
    %v827 = vunpack.c.l.b16 %v736
    %v828 = vunpack.c.h.b16 %v736
    %v829 = vunpack.c.l.b16 %v737
    %v830 = vunpack.c.h.b16 %v737
    %v831 = vunpack.c.l.b16 %v738
    %v832 = vunpack.c.h.b16 %v738
    %v833 = vunpack.c.l.b16 %v739
    %v834 = vunpack.c.h.b16 %v739
    %v835 = vunpack.c.l.b16 %v740
    %v836 = vunpack.c.h.b16 %v740
    %v837 = vunpack.c.l.b16 %v741
    %v838 = vunpack.c.h.b16 %v741
    %v839 = vunpack.c.l.b16 %v742
    %v840 = vunpack.c.h.b16 %v742
    %v841 = vunpack.c.l.b16 %v743
    %v842 = vunpack.c.h.b16 %v743
    %v843 = vunpack.c.l.b16 %v744
    %v844 = vunpack.c.h.b16 %v744
    %v845 = vunpack.c.l.b16 %v745
    %v846 = vunpack.c.h.b16 %v745
    %v847 = vunpack.c.l.b16 %v746
    %v848 = vunpack.c.h.b16 %v746
    %v849 = vunpack.c.l.b16 %v747
    %v850 = vunpack.c.h.b16 %v747
    %v851 = vunpack.c.l.b16 %v748
    %v852 = vunpack.c.h.b16 %v748
    %v853 = vunpack.c.l.b16 %v749
    %v854 = vunpack.c.h.b16 %v749
    %v855 = vunpack.c.l.b16 %v750
    %v856 = vunpack.c.h.b16 %v750
    %v857 = vunpack.c.l.b16 %v751
    %v858 = vunpack.c.h.b16 %v751
    %v859 = vunpack.c.l.b16 %v752
    %v860 = vunpack.c.h.b16 %v752
    %v861 = vpack.c.b16 %v799, %v797
    %v862 = vpack.c.b16 %v800, %v798
    %v863 = vpack.c.b16 %v803, %v801
    %v864 = vpack.c.b16 %v804, %v802
    %v865 = vpack.c.b16 %v807, %v805
    %v866 = vpack.c.b16 %v808, %v806
    %v867 = vpack.c.b16 %v811, %v809
    %v868 = vpack.c.b16 %v812, %v810
    %v869 = vpack.c.b16 %v815, %v813
    %v870 = vpack.c.b16 %v816, %v814
    %v871 = vpack.c.b16 %v819, %v817
    %v872 = vpack.c.b16 %v820, %v818
    %v873 = vpack.c.b16 %v823, %v821
    %v874 = vpack.c.b16 %v824, %v822
    %v875 = vpack.c.b16 %v827, %v825
    %v876 = vpack.c.b16 %v828, %v826
    %v877 = vpack.c.b16 %v831, %v829
    %v878 = vpack.c.b16 %v832, %v830
    %v879 = vpack.c.b16 %v835, %v833
    %v880 = vpack.c.b16 %v836, %v834
    %v881 = vpack.c.b16 %v839, %v837
    %v882 = vpack.c.b16 %v840, %v838
    %v883 = vpack.c.b16 %v843, %v841
    %v884 = vpack.c.b16 %v844, %v842
    %v885 = vpack.c.b16 %v847, %v845
    %v886 = vpack.c.b16 %v848, %v846
    %v887 = vpack.c.b16 %v851, %v849
    %v888 = vpack.c.b16 %v852, %v850
    %v889 = vpack.c.b16 %v855, %v853
    %v890 = vpack.c.b16 %v856, %v854
    %v891 = vpack.c.b16 %v859, %v857
    %v892 = vpack.c.b16 %v860, %v858
    %925 = vmatprep.subr.bf16.mxu0 %v862
    %926 = vmatpush1.bf16.msra.mxu0 %v861
    %927 = vmatprep.subr.bf16.mxu0 %v864
    %928 = vmatpush1.bf16.msra.mxu0 %v863
    %929 = vmatprep.subr.bf16.mxu0 %v866
    %930 = vmatpush1.bf16.msra.mxu0 %v865
    %931 = vmatprep.subr.bf16.mxu0 %v868
    %932 = vmatpush1.bf16.msra.mxu0 %v867
    %933 = vmatprep.subr.bf16.mxu0 %v870
    %934 = vmatpush1.bf16.msra.mxu0 %v869
    %935 = vmatprep.subr.bf16.mxu0 %v872
    %936 = vmatpush1.bf16.msra.mxu0 %v871
    %937 = vmatprep.subr.bf16.mxu0 %v874
    %938 = vmatpush1.bf16.msra.mxu0 %v873
    %939 = vmatprep.subr.bf16.mxu0 %v876
    %940 = vmatpush1.bf16.msra.mxu0 %v875
    %941 = vmatprep.subr.bf16.mxu0 %v878
    %942 = vmatpush1.bf16.msra.mxu0 %v877
    %943 = vmatprep.subr.bf16.mxu0 %v880
    %944 = vmatpush1.bf16.msra.mxu0 %v879
    %945 = vmatprep.subr.bf16.mxu0 %v882
    %946 = vmatpush1.bf16.msra.mxu0 %v881
    %947 = vmatprep.subr.bf16.mxu0 %v884
    %948 = vmatpush1.bf16.msra.mxu0 %v883
    %949 = vmatprep.subr.bf16.mxu0 %v886
    %950 = vmatpush1.bf16.msra.mxu0 %v885
    %951 = vmatprep.subr.bf16.mxu0 %v888
    %952 = vmatpush1.bf16.msra.mxu0 %v887
    %953 = vmatprep.subr.bf16.mxu0 %v890
    %954 = vmatpush1.bf16.msra.mxu0 %v889
    %955 = vmatprep.subr.bf16.mxu0 %v892
    %956 = vmatpush1.bf16.msra.mxu0 %v891
    %957 = vmatprep.mubr.bf16.mxu0 %v720
    %958 = vmatmul.mubr.bf16.gmra.mrb[0].mxu0 %v719
    %v959 = vpop.f32.mrb[0].mxu0
    %v960 = vadd.f32 %v758, %v959
    %v961 = vpop.f32.mrb[0].mxu0
    %v962 = vadd.f32 %v762, %v961
    %v963 = vpop.f32.mrb[0].mxu0
    %v964 = vadd.f32 %v758, %v963
    %v965 = vpop.f32.mrb[0].mxu0
    %v966 = vadd.f32 %v762, %v965
    %967 = vdwg.mxu0
    %v968 = vxor.u32 %v960, 2147483648
    %v969 = vxor.u32 %v962, 2147483648
    %v970 = vxor.u32 %v964, 2147483648
    %v971 = vxor.u32 %v966, 2147483648
    %v972 = vmul.f32 %v968, 1.442695
    %v973 = vpow.pop %v972
    %v974 = vmul.f32 %v969, 1.442695
    %v975 = vpow.pop %v974
    %v976 = vmul.f32 %v970, 1.442695
    %v977 = vpow.pop %v976
    %v978 = vmul.f32 %v971, 1.442695
    %v979 = vpow.pop %v978
    %v980 = vadd.f32 %v973, 1.0
    %v981 = vadd.f32 %v975, 1.0
    %v982 = vadd.f32 %v977, 1.0
    %v983 = vadd.f32 %v979, 1.0
    %v984 = vrcp.pop %v980
    %v985 = vmul.f32 1.0, %v984
    %v986 = vrcp.pop %v981
    %v987 = vmul.f32 1.0, %v986
    %v988 = vrcp.pop %v982
    %v989 = vmul.f32 1.0, %v988
    %v990 = vrcp.pop %v983
    %v991 = vmul.f32 1.0, %v990
    %992 = vst [vmem:[#allocation2] sm:$0xff] %v985
    %993 = vst [vmem:[#allocation2 + $0x8] sm:$0xff] %v987
    %994 = vst [vmem:[#allocation2 + $0x10] sm:$0xff] %v989
    %995 = vst [vmem:[#allocation2 + $0x18] sm:$0xff] %v991
    %996 = vst [vmem:[%s11] sm:$0xff] %v543
    %997 = vst [vmem:[%s11 + $0x8] sm:$0xff] %v545
    %998 = vst [vmem:[%s11 + $0x10] sm:$0xff] %v547
    %999 = vst [vmem:[%s11 + $0x18] sm:$0xff] %v549
    // Predicated region
    $region42: #{_run_kernel.1} parent=1 // pred_check
      _
    $region43: #{_run_kernel.1} parent=1 // pred_check_branch
      %1001 = sbr.rel (0) target = $region45
    $region44: #{_run_kernel.1} parent=1 // pred_region
      %s1003 = ssub.s32 512, 512
      %1004 = vsyncadd [#allocation3], %s1003
      %s1005 = sshll.u32 [#allocation2], 4
      %s1006 = int_to_ptr.vmem [resolvable:$true] %s1005
      %1011 = dma.vmem_to_hbm [thread:$0]  %s1006, 512, %s10, [#allocation3], 256, 256, 16
    $region45: #{_run_kernel.1} parent=1 // pred_fallthru
      _
    // Predicated region
    $region46: #{_run_kernel.1} parent=1 // pred_check
      _
    $region47: #{_run_kernel.1} parent=1 // pred_check_branch
      %1013 = sbr.rel (0) target = $region49
    $region48: #{_run_kernel.1} parent=1 // pred_region
      _
    $region49: #{_run_kernel.1} parent=1 // pred_fallthru
      _
    // Predicated region
    $region50: #{_run_kernel.1} parent=1 // pred_check
      _
    $region51: #{_run_kernel.1} parent=1 // pred_check_branch
      %1015 = sbr.rel (0) target = $region53
    $region52: #{_run_kernel.1} parent=1 // pred_region
      %1016 = dma.done [#allocation3], 512
    $region53: #{_run_kernel.1} parent=1 // pred_fallthru
      _
    // Predicated region
    $region54: #{_run_kernel.1} parent=1 // pred_check
      _
    $region55: #{_run_kernel.1} parent=1 // pred_check_branch
      %1018 = sbr.rel (0) target = $region57
    $region56: #{_run_kernel.1} parent=1 // pred_region
      _
    $region57: #{_run_kernel.1} parent=1 // pred_fallthru
      _
    %1019 = vsyncpa [#allocation3], 1

</llo_original>
